<compile_context>
chip_gen: v7x
topology: tpu7x:2x2x1
jax: 0.10.0
libtpu: 0.0.40
codegen_flags: <defaults>
</compile_context>

<pallas_src>
import jax
import jax.numpy as jnp
from jax.experimental import pallas as pl
from jax.experimental.pallas import tpu as pltpu


def _make_kernel(flat_out):
    def kernel(x_ref, wtop_ref, wbot_ref, bias_ref, o_ref):
        # x_ref: (tbh, 2, w, 2C) row-pair view of the raw input:
        #   x_ref[t, p1, wo, p2*C + c] == x[b, 2*hh + p1, 2*wo + p2, c]
        x = x_ref[...].astype(jnp.float32)
        xa = x[:, 0]                      # (tbh, w, 2C) p1 = 0 half of (p1 p2 c)
        xb = x[:, 1]                      # (tbh, w, 2C) p1 = 1 half
        c2 = xa.shape[-1]
        inv_c4 = 1.0 / (2.0 * c2)

        # One-pass LayerNorm statistics over the (virtual) 4C feature axis.
        s1 = (jnp.sum(xa, axis=-1, keepdims=True)
              + jnp.sum(xb, axis=-1, keepdims=True))
        s2 = (jnp.sum(xa * xa, axis=-1, keepdims=True)
              + jnp.sum(xb * xb, axis=-1, keepdims=True))
        mean = s1 * inv_c4
        var = s2 * inv_c4 - mean * mean
        inv = jax.lax.rsqrt(var + 1e-5)

        # gamma/beta are folded into wtop/wbot/bias in the wrapper, and the
        # weights already arrive in the matmul dtype (no per-step cast).
        wt = wtop_ref[...]
        wb = wbot_ref[...]
        mm_dtype = wt.dtype
        a_hat = ((xa - mean) * inv).astype(mm_dtype)
        b_hat = ((xb - mean) * inv).astype(mm_dtype)

        tbh, w, _ = xa.shape
        # (tbh, w) -> (tbh*w,) merge: layout-free when w % 8 == 0; Mosaic
        # inserts a VMEM repack otherwise.  (A rank-3 dot_general would avoid
        # the merge entirely once Mosaic supports multi-free-dim contractions.)
        a2 = a_hat.reshape(tbh * w, c2)
        b2 = b_hat.reshape(tbh * w, c2)
        y = (jnp.dot(a2, wt, preferred_element_type=jnp.float32)
             + jnp.dot(b2, wb, preferred_element_type=jnp.float32))
        y = y + bias_ref[...].astype(jnp.float32)
        if flat_out:
            o_ref[...] = y.astype(o_ref.dtype)          # lane-dense 2-D store
        else:
            o_ref[...] = y.reshape(o_ref.shape).astype(o_ref.dtype)

    return kernel


def _tpu_defaults():
    """Per-generation tiling / VMEM defaults."""
    kind = ""
    try:
        kind = jax.devices()[0].device_kind.lower()
    except Exception:
        pass
    if "v7" in kind:
        # 64 MiB VMEM per TensorCore, 2 cores: tighter tiles, >= 8 steps/core.
        return dict(min_grid=16, vmem_limit=48 * 1024 * 1024,
                    tile_budget=2 << 20)
    if ("v5 lite" in kind or "v5e" in kind or "v5lite" in kind
            or "v6" in kind or "trillium" in kind):
        # 128 MiB VMEM, single TensorCore: bigger tiles, enough steps to
        # keep the BlockSpec double-buffer pipeline full.
        return dict(min_grid=8, vmem_limit=64 * 1024 * 1024,
                    tile_budget=4 << 20)
    # Unknown part (or interpret mode): conservative.
    return dict(min_grid=8, vmem_limit=32 * 1024 * 1024, tile_budget=2 << 20)


def _rows_budget(in_row_bytes, f32_row_bytes, out_row_bytes, weight_bytes,
                 tile_budget, vmem_limit):
    """Max rows per tile so the *real* per-step VMEM high-water fits:
    2x input tile (double buffered) + ~4 f32 tile-sized temporaries
    + 2x output tile, leaving room for the (possibly double-buffered)
    weight blocks and slack."""
    per_row = 2 * in_row_bytes + 4 * f32_row_bytes + 2 * out_row_bytes
    avail = max(vmem_limit - 2 * weight_bytes - (4 << 20), per_row)
    return max(1, min(tile_budget // max(in_row_bytes, 1), avail // per_row))


def _choose_rows_per_tile(num_rows, rows_budget, min_grid):
    """Largest divisor of num_rows within the budget, keeping >= min_grid grid
    steps (pipelining on v5e/v6e, core sharding + pipelining on v7x)."""
    cap = min(rows_budget,
              num_rows if num_rows < min_grid else max(1, num_rows // min_grid))
    cap = max(cap, 1)
    best = 1
    for r in range(1, cap + 1):
        if num_rows % r == 0:
            best = r
    return best, cap


def patch_merging(x, gamma, beta, weight, bias, *, matmul_dtype=None):
    """Swin PatchMerging forward.

    x:      (B, H, W, C), channels-last
    gamma:  (4C,)  LayerNorm weight
    beta:   (4C,)  LayerNorm bias
    weight: (C, 4C) nn.Linear weight (PyTorch layout: out_features x in_features)
    bias:   (C,)   nn.Linear bias
    matmul_dtype: None/f32 (default, exact) or jnp.bfloat16 (opt-in, f32 accum)
    returns (B, H/2, W/2, C)
    """
    B, H, W, C = x.shape
    assert H % 2 == 0 and W % 2 == 0, "H and W must be even"
    h, w = H // 2, W // 2
    C2 = 2 * C

    # Free (contiguous, no-transpose) reshape: (B, 2h, 2w, C) -> (B*h, 2, w, 2C)
    # xv[r, p1, wo, p2*C + c] == x[b, 2*hh + p1, 2*wo + p2, c],  r = b*h + hh.
    R = B * h
    xv = x.reshape(R, 2, w, C2)

    # Fold LayerNorm affine into the reduction weight/bias, then split the
    # (p1 p2 c) feature axis into its p1=0 / p1=1 halves.  Pre-cast the folded
    # weights to the matmul dtype here (never inside the kernel).
    w_t = weight.astype(jnp.float32).T                        # (4C, C)
    w_fold = gamma.astype(jnp.float32)[:, None] * w_t         # (4C, C)
    b_fold = bias.astype(jnp.float32) + beta.astype(jnp.float32) @ w_t   # (C,)
    if matmul_dtype is not None and matmul_dtype != jnp.float32:
        w_fold = w_fold.astype(matmul_dtype)
    w_top = w_fold[:C2]                                       # p1 = 0 rows
    w_bot = w_fold[C2:]                                       # p1 = 1 rows
    b2 = b_fold.reshape(1, C)

    cfg = _tpu_defaults()
    in_row_bytes = 2 * w * C2 * x.dtype.itemsize       # input for 1 output row
    f32_row_bytes = 2 * w * C2 * 4
    out_row_bytes = w * C * x.dtype.itemsize
    weight_bytes = (2 * C2 * C + C) * w_fold.dtype.itemsize
    rows_budget = _rows_budget(in_row_bytes, f32_row_bytes, out_row_bytes,
                               weight_bytes, cfg["tile_budget"],
                               cfg["vmem_limit"])
    tbh, cap = _choose_rows_per_tile(R, rows_budget, cfg["min_grid"])

    # If R has only tiny divisors (e.g. prime), pad the row axis instead of
    # degrading to thousands of sub-budget tiles with exposed per-step overhead.
    pad_rows = 0
    if tbh * 4 <= cap:
        tbh = cap
        pad_rows = (-R) % tbh
        if pad_rows:
            xv = jnp.pad(xv, ((0, pad_rows), (0, 0), (0, 0), (0, 0)))
    R_pad = R + pad_rows
    grid = R_pad // tbh

    # Lane-contiguous 2-D output slab when the block row count is 8-aligned
    # (always legal when grid == 1 since the block equals the full array).
    flat_out = ((tbh * w) % 8 == 0) or grid == 1
    if flat_out:
        out_shape = jax.ShapeDtypeStruct((R_pad * w, C), x.dtype)
        out_spec = pl.BlockSpec((tbh * w, C), lambda i: (i, 0))
    else:
        out_shape = jax.ShapeDtypeStruct((R_pad, w, C), x.dtype)
        out_spec = pl.BlockSpec((tbh, w, C), lambda i: (i, 0, 0))

    kernel = _make_kernel(flat_out)

    # TODO(synk): consider pipeline_mode=pl.Buffered(3) on the token input for
    # v7x once the extra tile of VMEM is verified against the 64 MiB cap.
    out = pl.pallas_call(
        kernel,
        out_shape=out_shape,
        grid_spec=pltpu.PrefetchScalarGridSpec(
            num_scalar_prefetch=0,
            grid=(grid,),
            in_specs=[
                pl.BlockSpec((tbh, 2, w, C2), lambda i: (i, 0, 0, 0)),  # tokens
                pl.BlockSpec((C2, C), lambda i: (0, 0)),                # W' (p1=0)
                pl.BlockSpec((C2, C), lambda i: (0, 0)),                # W' (p1=1)
                pl.BlockSpec((1, C), lambda i: (0, 0)),                 # bias'
            ],
            out_specs=out_spec,
        ),
        compiler_params=pltpu.CompilerParams(
            dimension_semantics=("parallel",),
            vmem_limit_bytes=cfg["vmem_limit"],
        ),
    )(xv, w_top, w_bot, b2)

    if flat_out:
        out = out.reshape(R_pad, w, C)        # free contiguous reshape
    if pad_rows:
        out = out[:R]
    return out.reshape(B, h, w, C)            # free contiguous reshape


def _reference(x, gamma, beta, weight, bias):
    B, H, W, C = x.shape
    h, w = H // 2, W // 2
    # rearrange 'b (h p1) (w p2) c -> b h w (p1 p2 c)'
    xm = (x.reshape(B, h, 2, w, 2, C)
           .transpose(0, 1, 3, 2, 4, 5)
           .reshape(B, h, w, 4 * C))
    mean = jnp.mean(xm, axis=-1, keepdims=True)
    var = jnp.mean((xm - mean) ** 2, axis=-1, keepdims=True)
    xn = (xm - mean) / jnp.sqrt(var + 1e-5)
    xn = xn * gamma + beta
    return jnp.einsum("bhwk,ck->bhwc", xn, weight) + bias


if __name__ == "__main__":
    key = jax.random.PRNGKey(0)
    B, H, W, C = 2, 16, 16, 32            # dim = C = 32, 4*dim = 128
    k_x, k_w, k_b, k_g, k_be = jax.random.split(key, 5)

    x = jax.random.normal(k_x, (B, H, W, C), dtype=jnp.float32)

    # nn.Linear(4*dim, dim) / nn.LayerNorm(4*dim) shaped parameters.
    bound = 1.0 / jnp.sqrt(4.0 * C)
    weight = jax.random.uniform(k_w, (C, 4 * C), minval=-bound, maxval=bound,
                                dtype=jnp.float32)          # PyTorch (out, in)
    bias = jax.random.uniform(k_b, (C,), minval=-bound, maxval=bound,
                              dtype=jnp.float32)
    # Non-trivial LN affine so the gamma/beta folding is actually exercised.
    gamma = jax.random.uniform(k_g, (4 * C,), minval=0.5, maxval=1.5,
                               dtype=jnp.float32)
    beta = jax.random.uniform(k_be, (4 * C,), minval=-0.5, maxval=0.5,
                              dtype=jnp.float32)

    out = patch_merging(x, gamma, beta, weight, bias)
    out = jax.block_until_ready(out)

    ref = _reference(x, gamma, beta, weight, bias)
    assert out.shape == (B, H // 2, W // 2, C)
    assert jnp.allclose(out, ref, atol=1e-4, rtol=1e-4), \
        float(jnp.max(jnp.abs(out - ref)))

    print("KERNEL_OK")
</pallas_src>

<mosaic_0001>
module attributes {stable_mosaic.version = 11 : i64} {
  func.func @kernel(%arg0: i32, %arg1: memref<2x2x8x64xf32, #tpu.memory_space<vmem>>, %arg2: memref<64x32xf32, #tpu.memory_space<vmem>>, %arg3: memref<64x32xf32, #tpu.memory_space<vmem>>, %arg4: memref<1x32xf32, #tpu.memory_space<vmem>>, %arg5: memref<16x32xf32, #tpu.memory_space<vmem>>) attributes {dimension_semantics = [#tpu.dimension_semantics<parallel>], iteration_bounds = array<i64: 8>, scalar_prefetch = 0 : i64, scratch_operands = 0 : i64, tpu.core_type = #tpu.core_type<tc>, window_params = [{transform_indices = @transform_0, window_bounds = array<i64: 2, 2, 8, 64>}, {pipeline_mode = #tpu.pipeline_mode<synchronous>, transform_indices = @transform_1, window_bounds = array<i64: 64, 32>}, {pipeline_mode = #tpu.pipeline_mode<synchronous>, transform_indices = @transform_2, window_bounds = array<i64: 64, 32>}, {pipeline_mode = #tpu.pipeline_mode<synchronous>, transform_indices = @transform_3, window_bounds = array<i64: 1, 32>}, {transform_indices = @transform_4, window_bounds = array<i64: 16, 32>}]} {
    %c0 = arith.constant 0 : index
    %c0_0 = arith.constant 0 : index
    %c0_1 = arith.constant 0 : index
    %c0_2 = arith.constant 0 : index
    %0 = vector.load %arg1[%c0, %c0_0, %c0_1, %c0_2] : memref<2x2x8x64xf32, #tpu.memory_space<vmem>>, vector<2x2x8x64xf32>
    %1 = vector.extract_strided_slice %0 {offsets = [0, 0, 0, 0], sizes = [2, 1, 8, 64], strides = [1, 1, 1, 1]} : vector<2x2x8x64xf32> to vector<2x1x8x64xf32>
    %2 = vector.shape_cast %1 : vector<2x1x8x64xf32> to vector<2x8x64xf32>
    %3 = vector.extract_strided_slice %0 {offsets = [0, 1, 0, 0], sizes = [2, 1, 8, 64], strides = [1, 1, 1, 1]} : vector<2x2x8x64xf32> to vector<2x1x8x64xf32>
    %4 = vector.shape_cast %3 : vector<2x1x8x64xf32> to vector<2x8x64xf32>
    %cst = arith.constant dense<0.000000e+00> : vector<2x8xf32>
    %5 = vector.multi_reduction <add>, %2, %cst [2] : vector<2x8x64xf32> to vector<2x8xf32>
    %6 = vector.shape_cast %5 : vector<2x8xf32> to vector<2x8x1xf32>
    %cst_3 = arith.constant dense<0.000000e+00> : vector<2x8xf32>
    %7 = vector.multi_reduction <add>, %4, %cst_3 [2] : vector<2x8x64xf32> to vector<2x8xf32>
    %8 = vector.shape_cast %7 : vector<2x8xf32> to vector<2x8x1xf32>
    %9 = arith.addf %6, %8 : vector<2x8x1xf32>
    %10 = arith.mulf %2, %2 : vector<2x8x64xf32>
    %cst_4 = arith.constant dense<0.000000e+00> : vector<2x8xf32>
    %11 = vector.multi_reduction <add>, %10, %cst_4 [2] : vector<2x8x64xf32> to vector<2x8xf32>
    %12 = vector.shape_cast %11 : vector<2x8xf32> to vector<2x8x1xf32>
    %13 = arith.mulf %4, %4 : vector<2x8x64xf32>
    %cst_5 = arith.constant dense<0.000000e+00> : vector<2x8xf32>
    %14 = vector.multi_reduction <add>, %13, %cst_5 [2] : vector<2x8x64xf32> to vector<2x8xf32>
    %15 = vector.shape_cast %14 : vector<2x8xf32> to vector<2x8x1xf32>
    %16 = arith.addf %12, %15 : vector<2x8x1xf32>
    %cst_6 = arith.constant 7.812500e-03 : f32
    %17 = vector.broadcast %cst_6 : f32 to vector<2x8x1xf32>
    %18 = arith.mulf %9, %17 : vector<2x8x1xf32>
    %cst_7 = arith.constant 7.812500e-03 : f32
    %19 = vector.broadcast %cst_7 : f32 to vector<2x8x1xf32>
    %20 = arith.mulf %16, %19 : vector<2x8x1xf32>
    %21 = arith.mulf %18, %18 : vector<2x8x1xf32>
    %22 = arith.subf %20, %21 : vector<2x8x1xf32>
    %cst_8 = arith.constant 9.99999974E-6 : f32
    %23 = vector.broadcast %cst_8 : f32 to vector<2x8x1xf32>
    %24 = arith.addf %22, %23 : vector<2x8x1xf32>
    %25 = math.rsqrt %24 : vector<2x8x1xf32>
    %c0_9 = arith.constant 0 : index
    %c0_10 = arith.constant 0 : index
    %26 = vector.load %arg2[%c0_9, %c0_10] : memref<64x32xf32, #tpu.memory_space<vmem>>, vector<64x32xf32>
    %c0_11 = arith.constant 0 : index
    %c0_12 = arith.constant 0 : index
    %27 = vector.load %arg3[%c0_11, %c0_12] : memref<64x32xf32, #tpu.memory_space<vmem>>, vector<64x32xf32>
    %28 = vector.broadcast %18 : vector<2x8x1xf32> to vector<2x8x64xf32>
    %29 = arith.subf %2, %28 : vector<2x8x64xf32>
    %30 = vector.broadcast %25 : vector<2x8x1xf32> to vector<2x8x64xf32>
    %31 = arith.mulf %29, %30 : vector<2x8x64xf32>
    %32 = vector.broadcast %18 : vector<2x8x1xf32> to vector<2x8x64xf32>
    %33 = arith.subf %4, %32 : vector<2x8x64xf32>
    %34 = vector.broadcast %25 : vector<2x8x1xf32> to vector<2x8x64xf32>
    %35 = arith.mulf %33, %34 : vector<2x8x64xf32>
    %36 = vector.shape_cast %31 : vector<2x8x64xf32> to vector<16x64xf32>
    %37 = vector.shape_cast %35 : vector<2x8x64xf32> to vector<16x64xf32>
    %cst_13 = arith.constant dense<0.000000e+00> : vector<16x32xf32>
    %38 = tpu.matmul %36, %26, %cst_13 {dimension_numbers = #tpu.dot_dimension_numbers<[1], [0], [0], [1], [0, 0, 1, 1], [], []>} : vector<16x64xf32>, vector<64x32xf32>, vector<16x32xf32> -> vector<16x32xf32>
    %cst_14 = arith.constant dense<0.000000e+00> : vector<16x32xf32>
    %39 = tpu.matmul %37, %27, %cst_14 {dimension_numbers = #tpu.dot_dimension_numbers<[1], [0], [0], [1], [0, 0, 1, 1], [], []>} : vector<16x64xf32>, vector<64x32xf32>, vector<16x32xf32> -> vector<16x32xf32>
    %40 = arith.addf %38, %39 : vector<16x32xf32>
    %c0_15 = arith.constant 0 : index
    %c0_16 = arith.constant 0 : index
    %41 = vector.load %arg4[%c0_15, %c0_16] : memref<1x32xf32, #tpu.memory_space<vmem>>, vector<1x32xf32>
    %42 = vector.broadcast %41 : vector<1x32xf32> to vector<16x32xf32>
    %43 = arith.addf %40, %42 : vector<16x32xf32>
    %c0_17 = arith.constant 0 : index
    %c0_18 = arith.constant 0 : index
    %44 = vector.load %arg5[%c0_17, %c0_18] : memref<16x32xf32, #tpu.memory_space<vmem>>, vector<16x32xf32>
    tpu.vector_store %arg5[%c0_17, %c0_18], %43 {strides = array<i32>} : memref<16x32xf32, #tpu.memory_space<vmem>>, vector<16x32xf32>,
    return
  }
  func.func @transform_0(%arg0: i32) -> (i32, i32, i32, i32) {
    %c0_i32 = arith.constant 0 : i32
    %c0_i32_0 = arith.constant 0 : i32
    %c0_i32_1 = arith.constant 0 : i32
    %c0_i32_2 = arith.constant 0 : i32
    return %arg0, %c0_i32, %c0_i32_0, %c0_i32_1 : i32, i32, i32, i32
  }
  func.func @transform_1(%arg0: i32) -> (i32, i32) {
    %c0_i32 = arith.constant 0 : i32
    %c0_i32_0 = arith.constant 0 : i32
    %c0_i32_1 = arith.constant 0 : i32
    return %c0_i32, %c0_i32_0 : i32, i32
  }
  func.func @transform_2(%arg0: i32) -> (i32, i32) {
    %c0_i32 = arith.constant 0 : i32
    %c0_i32_0 = arith.constant 0 : i32
    %c0_i32_1 = arith.constant 0 : i32
    return %c0_i32, %c0_i32_0 : i32, i32
  }
  func.func @transform_3(%arg0: i32) -> (i32, i32) {
    %c0_i32 = arith.constant 0 : i32
    %c0_i32_0 = arith.constant 0 : i32
    %c0_i32_1 = arith.constant 0 : i32
    return %c0_i32, %c0_i32_0 : i32, i32
  }
  func.func @transform_4(%arg0: i32) -> (i32, i32) {
    %c0_i32 = arith.constant 0 : i32
    %c0_i32_0 = arith.constant 0 : i32
    return %arg0, %c0_i32 : i32, i32
  }
}

</mosaic_0001>

<llo_original>
// kernel: tpu_custom_call.1
$region0: #{tpu_custom_call.1}
  #allocation0 [shape = 'u32[]', space=smem, size = 0x4, offset = 0x4, fixed_abs, tag = 'smem constant byte address 0x4 - core index']
  #allocation1 [shape = 'u32[144,128]{1,0:T(1,128)}', space=vmem, size = 0x12000, scoped, tag = 'internal scratch']
  %s0 = inlined_call_operand.hbm [shape: f32[16,2,8,64], index: 0, kind: input, shape index: {}]
  %s1 = inlined_call_operand.vmem [shape: f32[64,32], index: 1, kind: input, shape index: {}]
  %s2 = inlined_call_operand.vmem [shape: f32[64,32], index: 2, kind: input, shape index: {}]
  %s3 = inlined_call_operand.vmem [shape: f32[1,32], index: 3, kind: input, shape index: {}]
  %s4 = inlined_call_operand.vmem [shape: f32[128,32], index: 4, kind: output, shape index: {}]
  %s5 = sld [smem:[#allocation0]]
  $region53: #{tpu_custom_call.1} parent=0
    _
  %s7 = ssub.s32 1, %s5
  %s8 = scalar_select 0, %s7, %s5
  $region1: #{tpu_custom_call.1} parent=0
    #allocation2 [shape = 'u8[32768]{0}', space=vmem, size = 0x8000, scoped, tag = 'input window, operand 0']
    #allocation3 [shape = 's32[2]{0}', space=sflag, size = 0x8, scoped, tag = 'scoped memory for tpu_custom_call.1']
    %9 = vsyncpa [#allocation3], 0
    %s10 = scalar_lea.sflag [#allocation3], 1
    %11 = vsyncpa %s10, 0
    loop: start=0, step=1, limit=10
    $region2: #{tpu_custom_call.1} parent=1 // loop_pre_header
      _
    $region3: #{tpu_custom_call.1} parent=1 // loop_header
      %s13 = sphi 0, %s17
      %p14 = scmp.ge.s32.totalorder %s13, 10
      %s23 = sphi 0, %s25
      %s26 = sphi 0, %s23
      %s27 = sphi 0, %s26
      %s43 = sphi 0, %s27
      %s47 = sphi 0, %s47
      %s49 = sphi 0, %s47
      %s50 = sphi 0, %s49
      %s64 = sphi 0, %s50
      %s68 = sphi 0, %s68
      %s70 = sphi 0, %s68
      %s71 = sphi 0, %s70
      %s85 = sphi 0, %s71
      %s89 = sphi 0, %s89
      %s91 = sphi 0, %s89
      %s92 = sphi 0, %s91
      %s106 = sphi 0, %s92
      %s112 = sphi 0, %s114
      %s115 = sphi 0, %s112
      %s116 = sphi 0, %s115
      %s132 = sphi 0, %s116
    $region4: #{tpu_custom_call.1} parent=1 // loop_header_branch
      %16 = sbr.rel (%p14) target = $region8
    $region5: #{tpu_custom_call.1} parent=1 // loop_body
      %s18 = ssub.s32 %s13, 1
      %s19 = ssub.s32 %s13, 2
      %s20 = sadd.s32 %s13, 1
      %s21 = ssub.s32 %s13, %s20
      %p22 = scmp.eq.s32.totalorder %s21, 0
      %s24 = sadd.s32 %s23, 1
      %s25 = scalar_select %p22, %s23, %s24
      %p28 = pneg %p22
      %p29 = scmp.eq.s32.totalorder %s13, 7
      %p30 = por %p28, %p29
      %p31 = scmp.ne.s32.totalorder %s23, %s26
      %p32 = scmp.eq.s32.totalorder %s13, 0
      %p33 = por %p31, %p32
      %p34 = scmp.ne.s32.totalorder %s23, %s26
      %p35 = scmp.eq.s32.totalorder %s18, 7
      %p36 = por %p34, %p35
      %p37 = scmp.ne.s32.totalorder %s26, %s27
      %p38 = scmp.eq.s32.totalorder %s18, 0
      %p39 = por %p37, %p38
      %p40 = scmp.ne.s32.totalorder %s26, %s27
      %p41 = scmp.eq.s32.totalorder %s19, 7
      %p42 = por %p40, %p41
      %p44 = scmp.ne.s32.totalorder %s27, %s43
      %p45 = scmp.eq.s32.totalorder %s19, 0
      %p46 = por %p44, %p45
      %s48 = sadd.s32 %s47, 1
      %p51 = scmp.eq.s32.totalorder %s13, 7
      %p52 = scmp.ne.s32.totalorder %s47, %s49
      %p53 = scmp.eq.s32.totalorder %s13, 0
      %p54 = por %p52, %p53
      %p55 = scmp.ne.s32.totalorder %s47, %s49
      %p56 = scmp.eq.s32.totalorder %s18, 7
      %p57 = por %p55, %p56
      %p58 = scmp.ne.s32.totalorder %s49, %s50
      %p59 = scmp.eq.s32.totalorder %s18, 0
      %p60 = por %p58, %p59
      %p61 = scmp.ne.s32.totalorder %s49, %s50
      %p62 = scmp.eq.s32.totalorder %s19, 7
      %p63 = por %p61, %p62
      %p65 = scmp.ne.s32.totalorder %s50, %s64
      %p66 = scmp.eq.s32.totalorder %s19, 0
      %p67 = por %p65, %p66
      %s69 = sadd.s32 %s68, 1
      %p72 = scmp.eq.s32.totalorder %s13, 7
      %p73 = scmp.ne.s32.totalorder %s68, %s70
      %p74 = scmp.eq.s32.totalorder %s13, 0
      %p75 = por %p73, %p74
      %p76 = scmp.ne.s32.totalorder %s68, %s70
      %p77 = scmp.eq.s32.totalorder %s18, 7
      %p78 = por %p76, %p77
      %p79 = scmp.ne.s32.totalorder %s70, %s71
      %p80 = scmp.eq.s32.totalorder %s18, 0
      %p81 = por %p79, %p80
      %p82 = scmp.ne.s32.totalorder %s70, %s71
      %p83 = scmp.eq.s32.totalorder %s19, 7
      %p84 = por %p82, %p83
      %p86 = scmp.ne.s32.totalorder %s71, %s85
      %p87 = scmp.eq.s32.totalorder %s19, 0
      %p88 = por %p86, %p87
      %s90 = sadd.s32 %s89, 1
      %p93 = scmp.eq.s32.totalorder %s13, 7
      %p94 = scmp.ne.s32.totalorder %s89, %s91
      %p95 = scmp.eq.s32.totalorder %s13, 0
      %p96 = por %p94, %p95
      %p97 = scmp.ne.s32.totalorder %s89, %s91
      %p98 = scmp.eq.s32.totalorder %s18, 7
      %p99 = por %p97, %p98
      %p100 = scmp.ne.s32.totalorder %s91, %s92
      %p101 = scmp.eq.s32.totalorder %s18, 0
      %p102 = por %p100, %p101
      %p103 = scmp.ne.s32.totalorder %s91, %s92
      %p104 = scmp.eq.s32.totalorder %s19, 7
      %p105 = por %p103, %p104
      %p107 = scmp.ne.s32.totalorder %s92, %s106
      %p108 = scmp.eq.s32.totalorder %s19, 0
      %p109 = por %p107, %p108
      %s110 = ssub.s32 %s13, %s20
      %p111 = scmp.eq.s32.totalorder %s110, 0
      %s113 = sadd.s32 %s112, 1
      %s114 = scalar_select %p111, %s112, %s113
      %p117 = pneg %p111
      %p118 = scmp.eq.s32.totalorder %s13, 7
      %p119 = por %p117, %p118
      %p120 = scmp.ne.s32.totalorder %s112, %s115
      %p121 = scmp.eq.s32.totalorder %s13, 0
      %p122 = por %p120, %p121
      %p123 = scmp.ne.s32.totalorder %s112, %s115
      %p124 = scmp.eq.s32.totalorder %s18, 7
      %p125 = por %p123, %p124
      %p126 = scmp.ne.s32.totalorder %s115, %s116
      %p127 = scmp.eq.s32.totalorder %s18, 0
      %p128 = por %p126, %p127
      %p129 = scmp.ne.s32.totalorder %s115, %s116
      %p130 = scmp.eq.s32.totalorder %s19, 7
      %p131 = por %p129, %p130
      %p133 = scmp.ne.s32.totalorder %s116, %s132
      %p134 = scmp.eq.s32.totalorder %s19, 0
      %p135 = por %p133, %p134
      %p136 = scmp.le.s32.totalorder 1, %s13
      %p137 = scmp.lt.s32.totalorder %s13, 9
      %p138 = pnand %p136, %p137
      %p139 = pneg %p138
      // Predicated region
      $region9: #{tpu_custom_call.1} parent=5 // pred_check
        _
      $region10: #{tpu_custom_call.1} parent=5 // pred_check_branch
        %141 = sbr.rel (%p138) target = $region12
      $region11: #{tpu_custom_call.1} parent=5 // pred_region
        %s142 = ssub.s32 %s13, 1
        // Predicated region
        $region13: #{tpu_custom_call.1} parent=11 // pred_check
          %p143 = pneg %p60
        $region14: #{tpu_custom_call.1} parent=11 // pred_check_branch
          %145 = sbr.rel (%p143) target = $region16
        $region15: #{tpu_custom_call.1} parent=11 // pred_region
          _
        $region16: #{tpu_custom_call.1} parent=11 // pred_fallthru
          _
        // Predicated region
        $region17: #{tpu_custom_call.1} parent=11 // pred_check
          %p146 = pneg %p81
        $region18: #{tpu_custom_call.1} parent=11 // pred_check_branch
          %148 = sbr.rel (%p146) target = $region20
        $region19: #{tpu_custom_call.1} parent=11 // pred_region
          _
        $region20: #{tpu_custom_call.1} parent=11 // pred_fallthru
          _
        // Predicated region
        $region21: #{tpu_custom_call.1} parent=11 // pred_check
          %p149 = pneg %p102
        $region22: #{tpu_custom_call.1} parent=11 // pred_check_branch
          %151 = sbr.rel (%p149) target = $region24
        $region23: #{tpu_custom_call.1} parent=11 // pred_region
          _
        $region24: #{tpu_custom_call.1} parent=11 // pred_fallthru
          _
      $region12: #{tpu_custom_call.1} parent=5 // pred_fallthru
        _
      %p152 = scmp.lt.s32.totalorder %s13, 8
      // Predicated region
      $region25: #{tpu_custom_call.1} parent=5 // pred_check
        %p153 = pneg %p152
      $region26: #{tpu_custom_call.1} parent=5 // pred_check_branch
        %155 = sbr.rel (%p153) target = $region28
      $region27: #{tpu_custom_call.1} parent=5 // pred_region
        // Predicated region
        $region29: #{tpu_custom_call.1} parent=27 // pred_check
          %p156 = pneg %p33
        $region30: #{tpu_custom_call.1} parent=27 // pred_check_branch
          %158 = sbr.rel (%p156) target = $region32
        $region31: #{tpu_custom_call.1} parent=27 // pred_region
          %s159 = sand.u32 %s23, 1
          %s160 = scalar_lea.sflag [#allocation3], %s159
          %s161 = sand.u32 %s23, 1
          %s162 = smul.addr %s161, 32
          %s163 = scalar_lea.vmem [#allocation2], %s162
          %s164 = smul.u32 2, %s13
          %s166 = ssub.s32 512, 512
          %167 = vsyncadd %s160, %s166
          %s168 = smul.addr %s164, 2
          %s169 = smul.addr %s168, 128
          %s170 = scalar_lea.hbm %s0, %s169
          %s171 = sshll.u32 %s163, 4
          %s172 = int_to_ptr.vmem [resolvable:$true] %s171
          %177 = dma.hbm_to_vmem [thread:$0]  %s170, 512, %s172, %s160, 128, 128, 8
        $region32: #{tpu_custom_call.1} parent=27 // pred_fallthru
          _
      $region28: #{tpu_custom_call.1} parent=5 // pred_fallthru
        _
      %p178 = scmp.le.s32.totalorder 1, %s13
      %p179 = scmp.lt.s32.totalorder %s13, 9
      %p180 = pnand %p178, %p179
      %p181 = pneg %p180
      // Predicated region
      $region33: #{tpu_custom_call.1} parent=5 // pred_check
        _
      $region34: #{tpu_custom_call.1} parent=5 // pred_check_branch
        %183 = sbr.rel (%p180) target = $region36
      $region35: #{tpu_custom_call.1} parent=5 // pred_region
        %s184 = ssub.s32 %s13, 1
        %s185 = sand.u32 %s26, 1
        %s186 = scalar_lea.sflag [#allocation3], %s185
        %s187 = sand.u32 %s26, 1
        %s188 = smul.addr %s187, 32
        %s189 = scalar_lea.vmem [#allocation2], %s188
        // Predicated region
        $region37: #{tpu_custom_call.1} parent=35 // pred_check
          %p190 = pneg %p39
        $region38: #{tpu_custom_call.1} parent=35 // pred_check_branch
          %192 = sbr.rel (%p190) target = $region40
        $region39: #{tpu_custom_call.1} parent=35 // pred_region
          %193 = dma.done %s186, 512
        $region40: #{tpu_custom_call.1} parent=35 // pred_fallthru
          _
        %s194 = sand.u32 %s26, 1
        %s195 = scalar_lea.sflag [#allocation3], %s194
        %s196 = sand.u32 %s26, 1
        %s197 = smul.addr %s196, 32
        %s198 = scalar_lea.vmem [#allocation2], %s197
        %p199 = pneg %p39
        %p200 = pneg %p36
        %p201 = pneg %p60
        %p202 = pneg %p57
        %p203 = pneg %p81
        %p204 = pneg %p78
        %p205 = pneg %p102
        %p206 = pneg %p99
        %p207 = pneg %p128
        %p208 = pneg %p125
        %s209 = smul.u32 2, %s18
        %p210 = scmp.lt.s32.totalorder %s209, 15
        %s211 = scalar_select %p210, %s209, 15
        %s212 = smul.addr %s211, 8
        %s213 = scalar_lea.vmem %s4, %s212
        %s214 = smul.u32 2, %s18
        %s215 = smul.u32 2, %s18
        %p216 = scmp.lt.s32.totalorder %s215, 15
        %s217 = scalar_select %p216, %s215, 15
        %s218 = smul.addr %s217, 8
        %s219 = scalar_lea.vmem %s4, %s218
        %s220 = smul.u32 2, %s18
        %v221 = vld [vmem:[%s189] sm:$0xff]
        %v222 = vld [vmem:[%s189 + $0x8] sm:$0xff]
        %v223 = vld [vmem:[%s189 + $0x10] sm:$0xff]
        %v224 = vld [vmem:[%s189 + $0x18] sm:$0xff]
        %vm225 = vcmask 523264
        %v226 = vsel %vm225, %v221, 0.0
        %227 = vadd.xlane.f32.xlu0 %v226
        %v228 = vpop.xlane.xlu0 %227
        %v229 = vsel %vm225, %v223, 0.0
        %230 = vadd.xlane.f32.xlu0 %v229
        %v231 = vpop.xlane.xlu0 %230
        %v232 = vsel %vm225, %v222, 0.0
        %233 = vadd.xlane.f32.xlu0 %v232
        %v234 = vpop.xlane.xlu0 %233
        %v235 = vsel %vm225, %v224, 0.0
        %236 = vadd.xlane.f32.xlu0 %v235
        %v237 = vpop.xlane.xlu0 %236
        %v238 = vadd.f32 %v228, %v234
        %v239 = vadd.f32 %v231, %v237
        %v240 = vmul.f32 %v221, %v221
        %v241 = vmul.f32 %v223, %v223
        %v242 = vsel %vm225, %v240, 0.0
        %243 = vadd.xlane.f32.xlu0 %v242
        %v244 = vpop.xlane.xlu0 %243
        %v245 = vsel %vm225, %v241, 0.0
        %246 = vadd.xlane.f32.xlu0 %v245
        %v247 = vpop.xlane.xlu0 %246
        %v248 = vmul.f32 %v222, %v222
        %v249 = vmul.f32 %v224, %v224
        %v250 = vsel %vm225, %v248, 0.0
        %251 = vadd.xlane.f32.xlu0 %v250
        %v252 = vpop.xlane.xlu0 %251
        %v253 = vsel %vm225, %v249, 0.0
        %254 = vadd.xlane.f32.xlu0 %v253
        %v255 = vpop.xlane.xlu0 %254
        %v256 = vadd.f32 %v244, %v252
        %v257 = vadd.f32 %v247, %v255
        %v258 = vmul.f32 %v238, 0.0078125
        %v259 = vmul.f32 %v239, 0.0078125
        %v260 = vmul.f32 %v256, 0.0078125
        %v261 = vmul.f32 %v257, 0.0078125
        %v262 = vmul.f32 %v258, %v258
        %v263 = vmul.f32 %v259, %v259
        %v264 = vsub.f32 %v260, %v262
        %v265 = vsub.f32 %v261, %v263
        %v266 = vadd.f32 %v264, 1e-05
        %v267 = vadd.f32 %v265, 1e-05
        %v268 = vrsqrt.pop %v266
        %v269 = vrsqrt.pop %v267
        %v270 = vld [vmem:[%s1] sm:$0xff]
        %v271 = vld [vmem:[%s1 + $0x8] sm:$0xff]
        %v272 = vld [vmem:[%s1 + $0x10] sm:$0xff]
        %v273 = vld [vmem:[%s1 + $0x18] sm:$0xff]
        %v274 = vld [vmem:[%s1 + $0x20] sm:$0xff]
        %v275 = vld [vmem:[%s1 + $0x28] sm:$0xff]
        %v276 = vld [vmem:[%s1 + $0x30] sm:$0xff]
        %v277 = vld [vmem:[%s1 + $0x38] sm:$0xff]
        %v278 = vld [vmem:[%s2] sm:$0xff]
        %v279 = vld [vmem:[%s2 + $0x8] sm:$0xff]
        %v280 = vld [vmem:[%s2 + $0x10] sm:$0xff]
        %v281 = vld [vmem:[%s2 + $0x18] sm:$0xff]
        %v282 = vld [vmem:[%s2 + $0x20] sm:$0xff]
        %v283 = vld [vmem:[%s2 + $0x28] sm:$0xff]
        %v284 = vld [vmem:[%s2 + $0x30] sm:$0xff]
        %v285 = vld [vmem:[%s2 + $0x38] sm:$0xff]
        %v286 = vsub.f32 %v221, %v258
        %v287 = vsub.f32 %v223, %v259
        %v288 = vmul.f32 %v286, %v268
        %v289 = vmul.f32 %v287, %v269
        %v290 = vsub.f32 %v222, %v258
        %v291 = vsub.f32 %v224, %v259
        %v292 = vmul.f32 %v290, %v268
        %v293 = vmul.f32 %v291, %v269
        %v295 = vsel %vm225, %v292, 0
        %v298 = vsel %vm225, %v293, 0
        %300 = vmatprep.subr.mxu0 0.0
        %301 = vmatpush1.msra.mxu0 %v278
        %302 = vmatprep.subr.mxu0 0.0
        %303 = vmatpush1.msra.mxu0 %v279
        %304 = vmatprep.subr.mxu0 0.0
        %305 = vmatpush1.msra.mxu0 %v280
        %306 = vmatprep.subr.mxu0 0.0
        %307 = vmatpush1.msra.mxu0 %v281
        %308 = vmatprep.subr.mxu0 0.0
        %309 = vmatpush1.msra.mxu0 %v282
        %310 = vmatprep.subr.mxu0 0.0
        %311 = vmatpush1.msra.mxu0 %v283
        %312 = vmatprep.subr.mxu0 0.0
        %313 = vmatpush1.msra.mxu0 %v284
        %314 = vmatprep.subr.mxu0 0.0
        %315 = vmatpush1.msra.mxu0 %v285
        %316 = vmatprep.subr.mxu0 0.0
        %317 = vmatpush1.msra.mxu0 0.0
        %318 = vmatprep.subr.mxu0 0.0
        %319 = vmatpush1.msra.mxu0 0.0
        %320 = vmatprep.subr.mxu0 0.0
        %321 = vmatpush1.msra.mxu0 0.0
        %322 = vmatprep.subr.mxu0 0.0
        %323 = vmatpush1.msra.mxu0 0.0
        %324 = vmatprep.subr.mxu0 0.0
        %325 = vmatpush1.msra.mxu0 0.0
        %326 = vmatprep.subr.mxu0 0.0
        %327 = vmatpush1.msra.mxu0 0.0
        %328 = vmatprep.subr.mxu0 0.0
        %329 = vmatpush1.msra.mxu0 0.0
        %330 = vmatprep.subr.mxu0 0.0
        %331 = vmatpush1.msra.mxu0 0.0
        %332 = vmatprep.subr.mxu0 0.0
        %333 = vmatpush1.msra.mxu0 0.0
        %334 = vmatprep.subr.mxu0 0.0
        %335 = vmatpush1.msra.mxu0 0.0
        %336 = vmatprep.subr.mxu0 0.0
        %337 = vmatpush1.msra.mxu0 0.0
        %338 = vmatprep.subr.mxu0 0.0
        %339 = vmatpush1.msra.mxu0 0.0
        %340 = vmatprep.subr.mxu0 0.0
        %341 = vmatpush1.msra.mxu0 0.0
        %342 = vmatprep.subr.mxu0 0.0
        %343 = vmatpush1.msra.mxu0 0.0
        %344 = vmatprep.subr.mxu0 0.0
        %345 = vmatpush1.msra.mxu0 0.0
        %346 = vmatprep.subr.mxu0 0.0
        %347 = vmatpush1.msra.mxu0 0.0
        %348 = vmatprep.subr.mxu0 0.0
        %349 = vmatpush1.msra.mxu0 0.0
        %350 = vmatprep.subr.mxu0 0.0
        %351 = vmatpush1.msra.mxu0 0.0
        %352 = vmatprep.subr.mxu0 0.0
        %353 = vmatpush1.msra.mxu0 0.0
        %354 = vmatprep.subr.mxu0 0.0
        %355 = vmatpush1.msra.mxu0 0.0
        %356 = vmatprep.subr.mxu0 0.0
        %357 = vmatpush1.msra.mxu0 0.0
        %358 = vmatprep.subr.mxu0 0.0
        %359 = vmatpush1.msra.mxu0 0.0
        %360 = vmatprep.subr.mxu0 0.0
        %361 = vmatpush1.msra.mxu0 0.0
        %362 = vmatprep.subr.mxu0 0.0
        %363 = vmatpush1.msra.mxu0 0.0
        %364 = vmatprep.mubr.f32.mxu0 0.0
        %365 = vmatmul.mubr.f32.gmra.mrb[0].mxu0 %v295
        %v366 = vpop.f32.mrb[0].mxu0
        %v367 = vadd.f32 0.0, %v366
        %v368 = vpop.f32.mrb[0].mxu0
        %369 = vmatprep.mubr.f32.mxu0 0.0
        %370 = vmatmul.mubr.f32.gmra.mrb[0].mxu0 %v298
        %v371 = vpop.f32.mrb[0].mxu0
        %v372 = vadd.f32 0.0, %v371
        %v373 = vpop.f32.mrb[0].mxu0
        %374 = vdwg.mxu0
        %v376 = vsel %vm225, %v288, 0
        %v379 = vsel %vm225, %v289, 0
        %381 = vmatprep.subr.mxu0 0.0
        %382 = vmatpush1.msra.mxu0 %v270
        %383 = vmatprep.subr.mxu0 0.0
        %384 = vmatpush1.msra.mxu0 %v271
        %385 = vmatprep.subr.mxu0 0.0
        %386 = vmatpush1.msra.mxu0 %v272
        %387 = vmatprep.subr.mxu0 0.0
        %388 = vmatpush1.msra.mxu0 %v273
        %389 = vmatprep.subr.mxu0 0.0
        %390 = vmatpush1.msra.mxu0 %v274
        %391 = vmatprep.subr.mxu0 0.0
        %392 = vmatpush1.msra.mxu0 %v275
        %393 = vmatprep.subr.mxu0 0.0
        %394 = vmatpush1.msra.mxu0 %v276
        %395 = vmatprep.subr.mxu0 0.0
        %396 = vmatpush1.msra.mxu0 %v277
        %397 = vmatprep.subr.mxu0 0.0
        %398 = vmatpush1.msra.mxu0 0.0
        %399 = vmatprep.subr.mxu0 0.0
        %400 = vmatpush1.msra.mxu0 0.0
        %401 = vmatprep.subr.mxu0 0.0
        %402 = vmatpush1.msra.mxu0 0.0
        %403 = vmatprep.subr.mxu0 0.0
        %404 = vmatpush1.msra.mxu0 0.0
        %405 = vmatprep.subr.mxu0 0.0
        %406 = vmatpush1.msra.mxu0 0.0
        %407 = vmatprep.subr.mxu0 0.0
        %408 = vmatpush1.msra.mxu0 0.0
        %409 = vmatprep.subr.mxu0 0.0
        %410 = vmatpush1.msra.mxu0 0.0
        %411 = vmatprep.subr.mxu0 0.0
        %412 = vmatpush1.msra.mxu0 0.0
        %413 = vmatprep.subr.mxu0 0.0
        %414 = vmatpush1.msra.mxu0 0.0
        %415 = vmatprep.subr.mxu0 0.0
        %416 = vmatpush1.msra.mxu0 0.0
        %417 = vmatprep.subr.mxu0 0.0
        %418 = vmatpush1.msra.mxu0 0.0
        %419 = vmatprep.subr.mxu0 0.0
        %420 = vmatpush1.msra.mxu0 0.0
        %421 = vmatprep.subr.mxu0 0.0
        %422 = vmatpush1.msra.mxu0 0.0
        %423 = vmatprep.subr.mxu0 0.0
        %424 = vmatpush1.msra.mxu0 0.0
        %425 = vmatprep.subr.mxu0 0.0
        %426 = vmatpush1.msra.mxu0 0.0
        %427 = vmatprep.subr.mxu0 0.0
        %428 = vmatpush1.msra.mxu0 0.0
        %429 = vmatprep.subr.mxu0 0.0
        %430 = vmatpush1.msra.mxu0 0.0
        %431 = vmatprep.subr.mxu0 0.0
        %432 = vmatpush1.msra.mxu0 0.0
        %433 = vmatprep.subr.mxu0 0.0
        %434 = vmatpush1.msra.mxu0 0.0
        %435 = vmatprep.subr.mxu0 0.0
        %436 = vmatpush1.msra.mxu0 0.0
        %437 = vmatprep.subr.mxu0 0.0
        %438 = vmatpush1.msra.mxu0 0.0
        %439 = vmatprep.subr.mxu0 0.0
        %440 = vmatpush1.msra.mxu0 0.0
        %441 = vmatprep.subr.mxu0 0.0
        %442 = vmatpush1.msra.mxu0 0.0
        %443 = vmatprep.subr.mxu0 0.0
        %444 = vmatpush1.msra.mxu0 0.0
        %445 = vmatprep.mubr.f32.mxu0 0.0
        %446 = vmatmul.mubr.f32.gmra.mrb[0].mxu0 %v376
        %v447 = vpop.f32.mrb[0].mxu0
        %v448 = vadd.f32 %v367, %v447
        %v449 = vpop.f32.mrb[0].mxu0
        %450 = vmatprep.mubr.f32.mxu0 0.0
        %451 = vmatmul.mubr.f32.gmra.mrb[0].mxu0 %v379
        %v452 = vpop.f32.mrb[0].mxu0
        %v453 = vadd.f32 %v372, %v452
        %v454 = vpop.f32.mrb[0].mxu0
        %455 = vdwg.mxu0
        %v456 = vld [vmem:[%s3] sm:$0x1]
        %v458 = vlaneseq
        %v459 = vshrl.u32 %v458, 7
        %v460 = vsub.s32 0, %v459
        %v461 = vrot.slane %v456, %v460
        %v463 = vadd.f32 %v448, %v461
        %v464 = vadd.f32 %v453, %v461
        %vm465 = vcmask 261120
        %466 = vst.msk [vmem:[%s219] sm:$0xff] %vm465, %v463
        %467 = vst.msk [vmem:[%s219 + $0x8] sm:$0xff] %vm465, %v464
        %s468 = smul.u32 2, %s18
        %p469 = scmp.lt.s32.totalorder %s468, 15
        %s470 = scalar_select %p469, %s468, 15
        %s471 = smul.addr %s470, 8
        %s472 = scalar_lea.vmem %s4, %s471
        // Predicated region
        $region41: #{tpu_custom_call.1} parent=35 // pred_check
          %p473 = pneg %p125
        $region42: #{tpu_custom_call.1} parent=35 // pred_check_branch
          %475 = sbr.rel (%p473) target = $region44
        $region43: #{tpu_custom_call.1} parent=35 // pred_region
          %s476 = smul.u32 2, %s18
        $region44: #{tpu_custom_call.1} parent=35 // pred_fallthru
          _
      $region36: #{tpu_custom_call.1} parent=5 // pred_fallthru
        _
      %p477 = scmp.le.s32.totalorder 2, %s13
      // Predicated region
      $region45: #{tpu_custom_call.1} parent=5 // pred_check
        %p478 = pneg %p477
      $region46: #{tpu_custom_call.1} parent=5 // pred_check_branch
        %480 = sbr.rel (%p478) target = $region48
      $region47: #{tpu_custom_call.1} parent=5 // pred_region
        %s481 = ssub.s32 %s13, 2
        // Predicated region
        $region49: #{tpu_custom_call.1} parent=47 // pred_check
          %p482 = pneg %p131
        $region50: #{tpu_custom_call.1} parent=47 // pred_check_branch
          %484 = sbr.rel (%p482) target = $region52
        $region51: #{tpu_custom_call.1} parent=47 // pred_region
          %s485 = smul.u32 2, %s19
          %p486 = scmp.lt.s32.totalorder %s485, 15
          %s487 = scalar_select %p486, %s485, 15
          %s488 = smul.addr %s487, 8
          %s489 = scalar_lea.vmem %s4, %s488
        $region52: #{tpu_custom_call.1} parent=47 // pred_fallthru
          _
      $region48: #{tpu_custom_call.1} parent=5 // pred_fallthru
        _
    $region6: #{tpu_custom_call.1} parent=1 // loop_footer
      %s17 = sadd.s32 1, %s13
    $region7: #{tpu_custom_call.1} parent=1 // loop_footer_branch
      %12 = sbr.rel target = $region3
    $region8: #{tpu_custom_call.1} parent=1 // loop_exit
      _
    %490 = vsyncpa [#allocation3], 1
    %s491 = scalar_lea.sflag [#allocation3], 1
    %492 = vsyncpa %s491, 1

</llo_original>
